<compile_context>
chip_gen: v7x
topology: tpu7x:2x2x1
jax: 0.10.0
libtpu: 0.0.40
codegen_flags: <defaults>
</compile_context>

<pallas_src>
import jax
import jax.numpy as jnp
from jax import lax
from jax.experimental import pallas as pl
from jax.experimental.pallas import tpu as pltpu


def switcher_kernel(h_ref, c_ref, y_ref,
                    w1h_ref, w1c_ref, b1_ref,
                    w2_ref, b2_ref,
                    w3h_ref, w3c_ref, w3y_ref, b3_ref,
                    dist_ref, pgen_ref, hct_ref,
                    hct_bf16, m_s, l_s, m_tiles):
    j = pl.program_id(1)
    nv = pl.num_programs(1)
    tile_v = w2_ref.shape[1]

    # ---- once per batch tile: proj_1, proj_3, softmax-state init ------------
    @pl.when(j == 0)
    def _init():
        h = h_ref[...]
        c = c_ref[...]
        y = y_ref[...]

        # proj_1 + tanh (concat-free split matmul, f32 accumulate on the MXU)
        z1 = (jnp.dot(h, w1h_ref[...], preferred_element_type=jnp.float32)
              + jnp.dot(c, w1c_ref[...], preferred_element_type=jnp.float32)
              + b1_ref[...])
        h_c_t = jnp.tanh(z1)
        hct_ref[...] = h_c_t.astype(hct_ref.dtype)
        hct_bf16[...] = h_c_t.astype(hct_bf16.dtype)

        # proj_3 + sigmoid: N=1 output -> VPU multiply + lane reduce (no MXU)
        z3 = (jnp.sum(h * w3h_ref[...], axis=-1, keepdims=True)
              + jnp.sum(c * w3c_ref[...], axis=-1, keepdims=True)
              + jnp.sum(y * w3y_ref[...], axis=-1, keepdims=True)
              + b3_ref[0, 0])
        pgen_ref[...] = jax.nn.sigmoid(z3).astype(pgen_ref.dtype)

        # online-softmax running stats
        m_s[...] = jnp.full(m_s.shape, -jnp.inf, dtype=m_s.dtype)
        l_s[...] = jnp.zeros(l_s.shape, dtype=l_s.dtype)

    # ---- proj_2 logits for this vocab tile (bf16 weights, f32 accumulate) ---
    z2 = jnp.dot(hct_bf16[...], w2_ref[...],
                 preferred_element_type=jnp.float32) + b2_ref[...]

    # Online max / sum-exp update; stash exp(z - m_running) (<= 1, no overflow)
    # directly into the lane-dense [bt, V] resident output block.
    m_prev = m_s[...]
    m_new = jnp.maximum(m_prev, jnp.max(z2, axis=-1, keepdims=True))
    s2 = jnp.exp(z2 - m_new)
    l_s[...] = l_s[...] * jnp.exp(m_prev - m_new) + jnp.sum(s2, axis=-1, keepdims=True)
    m_s[...] = m_new
    m_tiles[j] = m_new

    off = pl.multiple_of(j * tile_v, 128)          # unmasked lane-aligned store
    dist_ref[:, pl.ds(off, tile_v)] = s2

    # ---- last vocab tile: per-tile rescale (chunked, no big live ranges) ----
    @pl.when(j == nv - 1)
    def _finalize():
        # Exact reciprocal: softmax rows must sum to 1 (approx=True broke this).
        inv_l = 1.0 / l_s[...]
        m_fin = m_s[...]

        def body(t, carry):
            o = pl.multiple_of(t * tile_v, 128)
            scale = jnp.exp(m_tiles[t] - m_fin) * inv_l        # [bt, 1]
            tile = dist_ref[:, pl.ds(o, tile_v)]
            dist_ref[:, pl.ds(o, tile_v)] = tile * scale
            return carry

        lax.fori_loop(0, nv, body, 0)


# --------------------------------------------------------------------------- #
# Tiling / budget helpers
# --------------------------------------------------------------------------- #
def _round_up(x: int, m: int) -> int:
    return ((x + m - 1) // m) * m


def _pick_vocab_tiling(vocab: int, cap: int) -> tuple[int, int]:
    """Returns (padded_vocab, tile_v); tile_v is a 128-multiple dividing padded_vocab."""
    cap128 = max(128, (int(cap) // 128) * 128)
    v128 = _round_up(vocab, 128)
    if v128 <= cap128:
        return v128, v128
    # Prefer a large 128-multiple divisor of the 128-padded vocab.
    t = cap128
    lo = max(128, cap128 // 2)
    while t >= lo:
        if v128 % t == 0:
            return v128, t
        t -= 128
    # Otherwise pad the vocab up to a multiple of the cap (padded logits masked out).
    return _round_up(vocab, cap128), cap128


def _pick_batch_tile(batch: int, cap: int) -> int:
    """Largest divisor of batch <= cap, preferring multiples of 16 (bf16 packing)."""
    cap = max(1, min(int(cap), batch))
    best8 = None
    for t in range(cap, 0, -1):
        if batch % t:
            continue
        if t % 16 == 0:
            return t
        if best8 is None and t % 8 == 0:
            best8 = t
    return best8 if best8 is not None else batch


def _vmem_budget_bytes() -> int:
    """Generation-aware VMEM budget with headroom; safe fallback off-TPU."""
    try:
        info = pltpu.get_tpu_info()
        cap = int(getattr(info, "vmem_capacity_bytes", 64 << 20))
    except Exception:
        cap = 64 << 20
    return max(16 << 20, int(cap * 0.75))


# --------------------------------------------------------------------------- #
# One-time weight preparation (hoisted out of the decode loop)
# --------------------------------------------------------------------------- #
def prepare_switcher_params(params, hid, ctx, emb, *, max_tile_v=4096):
    """Split concat weights, cast W2 to bf16, pad vocab — ONCE, not per call."""
    w1, b1, w2, b2, w3, b3 = (params["w1"], params["b1"], params["w2"],
                              params["b2"], params["w3"], params["b3"])
    n_out1 = w1.shape[1]
    vocab = w2.shape[1]
    v_pad, tile_v = _pick_vocab_tiling(vocab, max_tile_v)

    w2_bf16 = w2.astype(jnp.bfloat16)
    b2_f32 = b2.astype(jnp.float32)
    if v_pad != vocab:
        w2_bf16 = jnp.pad(w2_bf16, ((0, 0), (0, v_pad - vocab)))
        # Very negative bias on pad columns -> probability exactly 0 after softmax.
        b2_f32 = jnp.pad(b2_f32, ((0, 0), (0, v_pad - vocab)),
                         constant_values=-1e30)

    return {
        "w1_h": w1[:hid, :], "w1_c": w1[hid:, :],
        "b1": b1.astype(jnp.float32),
        "w2_bf16": w2_bf16, "b2": b2_f32,
        "w3_h": w3[:hid, :].T,                 # [1, H] lane-dense rows
        "w3_c": w3[hid:hid + ctx, :].T,        # [1, C]
        "w3_y": w3[hid + ctx:, :].T,           # [1, E]
        "b3": b3.reshape(1, 1).astype(jnp.float32),
        "n_out1": n_out1, "vocab": vocab, "vocab_pad": v_pad, "tile_v": tile_v,
    }


# --------------------------------------------------------------------------- #
# Forward
# --------------------------------------------------------------------------- #
def switcher_forward(h_t, c_t, y_t, prep, *, batch_tile=None):
    """Switcher forward: one Pallas call, vocab-tiled bf16 W2 stream, dist in [B, V]."""
    B, H = h_t.shape
    C = c_t.shape[1]
    E = y_t.shape[1]
    n_out1 = prep["n_out1"]
    vocab = prep["vocab"]
    v_pad = prep["vocab_pad"]
    tile_v = prep["tile_v"]
    nv = v_pad // tile_v

    budget = _vmem_budget_bytes()

    # Batch tile: feed the MXU, but keep the resident [bt, v_pad] dist block
    # (x2 buffers) inside the VMEM budget (v7x only has 64 MiB total).
    if batch_tile is None:
        dist_budget = max(1 << 20, budget // 2)
        bt_cap = max(8, (dist_budget // (2 * 4 * v_pad)) // 8 * 8)
        batch_tile = _pick_batch_tile(B, min(128, bt_cap))
    bt = min(batch_tile, B)
    assert B % bt == 0, "batch must be divisible by the batch tile"
    nb = B // bt
    # TODO(synk): on v7x with nb == 1 the 'parallel' axis idles one TensorCore;
    # a per-core vocab split + cross-core softmax merge would recover it.

    in_specs = [
        pl.BlockSpec((bt, H), lambda i, j: (i, 0)),            # h_t
        pl.BlockSpec((bt, C), lambda i, j: (i, 0)),            # c_t
        pl.BlockSpec((bt, E), lambda i, j: (i, 0)),            # y_t
        pl.BlockSpec((H, n_out1), lambda i, j: (0, 0)),        # w1_h
        pl.BlockSpec((C, n_out1), lambda i, j: (0, 0)),        # w1_c
        pl.BlockSpec((1, n_out1), lambda i, j: (0, 0)),        # b1
        pl.BlockSpec((n_out1, tile_v), lambda i, j: (0, j)),   # w2 (streamed, bf16)
        pl.BlockSpec((1, tile_v), lambda i, j: (0, j)),        # b2 (streamed)
        pl.BlockSpec((1, H), lambda i, j: (0, 0)),             # w3_h
        pl.BlockSpec((1, C), lambda i, j: (0, 0)),             # w3_c
        pl.BlockSpec((1, E), lambda i, j: (0, 0)),             # w3_y
        pl.BlockSpec((1, 1), lambda i, j: (0, 0),
                     memory_space=pltpu.MemorySpace.SMEM),     # b3 scalar
    ]
    out_shapes = (
        jax.ShapeDtypeStruct((B, v_pad), jnp.float32),         # dist (final layout)
        jax.ShapeDtypeStruct((B, 1), jnp.float32),             # p_gen
        jax.ShapeDtypeStruct((B, n_out1), jnp.float32),        # h_c_t
    )
    out_specs = (
        pl.BlockSpec((bt, v_pad), lambda i, j: (i, 0)),        # resident across j
        pl.BlockSpec((bt, 1), lambda i, j: (i, 0)),
        pl.BlockSpec((bt, n_out1), lambda i, j: (i, 0)),
    )
    scratch_shapes = [
        pltpu.VMEM((bt, n_out1), jnp.bfloat16),   # h_c_t in MXU input dtype
        pltpu.VMEM((bt, 1), jnp.float32),         # running max
        pltpu.VMEM((bt, 1), jnp.float32),         # running sum-exp
        pltpu.VMEM((nv, bt, 1), jnp.float32),     # per-tile running max snapshot
    ]

    # VMEM estimate (double-buffered streamed tiles + resident blocks).
    est = (2 * n_out1 * tile_v * 2            # bf16 W2 tiles
           + 2 * tile_v * 4                   # b2 tiles
           + 2 * bt * v_pad * 4               # resident dist block
           + (H + C) * n_out1 * 4             # W1
           + 4 * bt * (H + C + E + n_out1) * 4
           + 2 * nv * bt * 4)
    vmem_limit = int(min(budget, max(16 << 20, 2 * est)))

    dist_full, p_gen, h_c_t = pl.pallas_call(
        switcher_kernel,
        grid=(nb, nv),
        in_specs=in_specs,
        out_shape=out_shapes,
        out_specs=out_specs,
        scratch_shapes=scratch_shapes,
        compiler_params=pltpu.CompilerParams(
            dimension_semantics=("parallel", "arbitrary"),
            vmem_limit_bytes=vmem_limit),
    )(h_t, c_t, y_t, prep["w1_h"], prep["w1_c"], prep["b1"],
      prep["w2_bf16"], prep["b2"], prep["w3_h"], prep["w3_c"],
      prep["w3_y"], prep["b3"])

    dist_t = dist_full if v_pad == vocab else dist_full[:, :vocab]
    return dist_t, p_gen, h_c_t


# --------------------------------------------------------------------------- #
# Parameters / reference / test
# --------------------------------------------------------------------------- #
def init_params(key, hid, ctx, emb, vocab):
    """Deterministic synthetic parameters (weights stored as [in, out])."""
    n_in1, n_out1 = hid + ctx, hid
    n_in2, n_out2 = n_out1, vocab
    n_in3, n_out3 = hid + ctx + emb, 1
    ks = jax.random.split(key, 6)
    scale = 0.05
    return {
        "w1": scale * jax.random.normal(ks[0], (n_in1, n_out1), jnp.float32),
        "b1": scale * jax.random.normal(ks[1], (1, n_out1), jnp.float32),
        "w2": scale * jax.random.normal(ks[2], (n_in2, n_out2), jnp.float32),
        "b2": scale * jax.random.normal(ks[3], (1, n_out2), jnp.float32),
        "w3": scale * jax.random.normal(ks[4], (n_in3, n_out3), jnp.float32),
        "b3": scale * jax.random.normal(ks[5], (1, n_out3), jnp.float32),
    }


def switcher_ref(h_t, c_t, y_t, p):
    """Pure-JAX reference of the PyTorch forward for correctness checking."""
    h_c = jnp.concatenate([h_t, c_t], axis=-1)
    h_c_t = jnp.tanh(h_c @ p["w1"] + p["b1"])
    dist_t = jax.nn.softmax(h_c_t @ p["w2"] + p["b2"], axis=-1)
    p_gen = jax.nn.sigmoid(jnp.concatenate([h_t, c_t, y_t], axis=-1) @ p["w3"] + p["b3"])
    return dist_t, p_gen, h_c_t


if __name__ == "__main__":
    B, HID, CTX, EMB, VOCAB = 8, 32, 32, 32, 128

    key = jax.random.PRNGKey(0)
    k_h, k_c, k_y, k_p = jax.random.split(key, 4)
    h_t = jax.random.normal(k_h, (B, HID), jnp.float32)
    c_t = jax.random.normal(k_c, (B, CTX), jnp.float32)
    y_t = jax.random.normal(k_y, (B, EMB), jnp.float32)
    params = init_params(k_p, HID, CTX, EMB, VOCAB)

    # One-time weight prep (bf16 W2, concat splits, vocab padding) — hoisted.
    prep = prepare_switcher_params(params, HID, CTX, EMB)

    dist_t, p_gen, h_c_t = switcher_forward(h_t, c_t, y_t, prep)
    jax.block_until_ready((dist_t, p_gen, h_c_t))

    # sanity check vs. pure-JAX f32 reference
    dist_r, pgen_r, hct_r = switcher_ref(h_t, c_t, y_t, params)
    # W2 is streamed in bf16 -> looser tolerance on the distribution values.
    assert jnp.allclose(dist_t, dist_r, atol=1e-3, rtol=1e-2)
    # Exact reciprocal in the finalize -> rows sum to 1 tightly.
    assert jnp.allclose(jnp.sum(dist_t, axis=-1), 1.0, atol=1e-3)
    assert jnp.allclose(p_gen, pgen_r, atol=1e-5, rtol=1e-5)
    assert jnp.allclose(h_c_t, hct_r, atol=1e-4, rtol=1e-3)

    print("KERNEL_OK")
</pallas_src>

<mosaic_0001>
module attributes {stable_mosaic.version = 11 : i64} {
  func.func @switcher_kernel(%arg0: i32, %arg1: i32, %arg2: memref<8x32xf32, #tpu.memory_space<vmem>>, %arg3: memref<8x32xf32, #tpu.memory_space<vmem>>, %arg4: memref<8x32xf32, #tpu.memory_space<vmem>>, %arg5: memref<32x32xf32, #tpu.memory_space<vmem>>, %arg6: memref<32x32xf32, #tpu.memory_space<vmem>>, %arg7: memref<1x32xf32, #tpu.memory_space<vmem>>, %arg8: memref<32x128xbf16, #tpu.memory_space<vmem>>, %arg9: memref<1x128xf32, #tpu.memory_space<vmem>>, %arg10: memref<1x32xf32, #tpu.memory_space<vmem>>, %arg11: memref<1x32xf32, #tpu.memory_space<vmem>>, %arg12: memref<1x32xf32, #tpu.memory_space<vmem>>, %arg13: memref<1x1xf32, #tpu.memory_space<smem>>, %arg14: memref<8x128xf32, #tpu.memory_space<vmem>>, %arg15: memref<8x1xf32, #tpu.memory_space<vmem>>, %arg16: memref<8x32xf32, #tpu.memory_space<vmem>>, %arg17: memref<8x32xbf16, #tpu.memory_space<vmem>>, %arg18: memref<8x1xf32, #tpu.memory_space<vmem>>, %arg19: memref<8x1xf32, #tpu.memory_space<vmem>>, %arg20: memref<1x8x1xf32, #tpu.memory_space<vmem>>) attributes {dimension_semantics = [#tpu.dimension_semantics<parallel>, #tpu.dimension_semantics<arbitrary>], iteration_bounds = array<i64: 1, 1>, scalar_prefetch = 0 : i64, scratch_operands = 4 : i64, tpu.core_type = #tpu.core_type<tc>, window_params = [{transform_indices = @transform_0, window_bounds = array<i64: 8, 32>}, {transform_indices = @transform_1, window_bounds = array<i64: 8, 32>}, {transform_indices = @transform_2, window_bounds = array<i64: 8, 32>}, {pipeline_mode = #tpu.pipeline_mode<synchronous>, transform_indices = @transform_3, window_bounds = array<i64: 32, 32>}, {pipeline_mode = #tpu.pipeline_mode<synchronous>, transform_indices = @transform_4, window_bounds = array<i64: 32, 32>}, {pipeline_mode = #tpu.pipeline_mode<synchronous>, transform_indices = @transform_5, window_bounds = array<i64: 1, 32>}, {transform_indices = @transform_6, window_bounds = array<i64: 32, 128>}, {transform_indices = @transform_7, window_bounds = array<i64: 1, 128>}, {pipeline_mode = #tpu.pipeline_mode<synchronous>, transform_indices = @transform_8, window_bounds = array<i64: 1, 32>}, {pipeline_mode = #tpu.pipeline_mode<synchronous>, transform_indices = @transform_9, window_bounds = array<i64: 1, 32>}, {pipeline_mode = #tpu.pipeline_mode<synchronous>, transform_indices = @transform_10, window_bounds = array<i64: 1, 32>}, {transform_indices = @transform_11, window_bounds = array<i64: 1, 1>}, {transform_indices = @transform_12, window_bounds = array<i64: 8, 128>}, {transform_indices = @transform_13, window_bounds = array<i64: 8, 1>}, {transform_indices = @transform_14, window_bounds = array<i64: 8, 32>}]} {
    %c0_i32 = arith.constant 0 : i32
    %0 = arith.cmpi eq, %arg1, %c0_i32 : i32
    %1 = arith.extui %0 : i1 to i32
    %c0_i32_0 = arith.constant 0 : i32
    %2 = arith.cmpi ne, %1, %c0_i32_0 : i32
    scf.if %2 {
      %c0_21 = arith.constant 0 : index
      %c0_22 = arith.constant 0 : index
      %36 = vector.load %arg2[%c0_21, %c0_22] : memref<8x32xf32, #tpu.memory_space<vmem>>, vector<8x32xf32>
      %c0_23 = arith.constant 0 : index
      %c0_24 = arith.constant 0 : index
      %37 = vector.load %arg3[%c0_23, %c0_24] : memref<8x32xf32, #tpu.memory_space<vmem>>, vector<8x32xf32>
      %c0_25 = arith.constant 0 : index
      %c0_26 = arith.constant 0 : index
      %38 = vector.load %arg4[%c0_25, %c0_26] : memref<8x32xf32, #tpu.memory_space<vmem>>, vector<8x32xf32>
      %c0_27 = arith.constant 0 : index
      %c0_28 = arith.constant 0 : index
      %39 = vector.load %arg5[%c0_27, %c0_28] : memref<32x32xf32, #tpu.memory_space<vmem>>, vector<32x32xf32>
      %cst_29 = arith.constant dense<0.000000e+00> : vector<8x32xf32>
      %40 = tpu.matmul %36, %39, %cst_29 {dimension_numbers = #tpu.dot_dimension_numbers<[1], [0], [0], [1], [0, 0, 1, 1], [], []>} : vector<8x32xf32>, vector<32x32xf32>, vector<8x32xf32> -> vector<8x32xf32>
      %c0_30 = arith.constant 0 : index
      %c0_31 = arith.constant 0 : index
      %41 = vector.load %arg6[%c0_30, %c0_31] : memref<32x32xf32, #tpu.memory_space<vmem>>, vector<32x32xf32>
      %cst_32 = arith.constant dense<0.000000e+00> : vector<8x32xf32>
      %42 = tpu.matmul %37, %41, %cst_32 {dimension_numbers = #tpu.dot_dimension_numbers<[1], [0], [0], [1], [0, 0, 1, 1], [], []>} : vector<8x32xf32>, vector<32x32xf32>, vector<8x32xf32> -> vector<8x32xf32>
      %43 = arith.addf %40, %42 : vector<8x32xf32>
      %c0_33 = arith.constant 0 : index
      %c0_34 = arith.constant 0 : index
      %44 = vector.load %arg7[%c0_33, %c0_34] : memref<1x32xf32, #tpu.memory_space<vmem>>, vector<1x32xf32>
      %45 = vector.broadcast %44 : vector<1x32xf32> to vector<8x32xf32>
      %46 = arith.addf %43, %45 : vector<8x32xf32>
      %47 = math.tanh %46 : vector<8x32xf32>
      %c0_35 = arith.constant 0 : index
      %c0_36 = arith.constant 0 : index
      %48 = vector.load %arg16[%c0_35, %c0_36] : memref<8x32xf32, #tpu.memory_space<vmem>>, vector<8x32xf32>
      tpu.vector_store %arg16[%c0_35, %c0_36], %47 {strides = array<i32>} : memref<8x32xf32, #tpu.memory_space<vmem>>, vector<8x32xf32>,
      %49 = arith.truncf %47 : vector<8x32xf32> to vector<8x32xbf16>
      %c0_37 = arith.constant 0 : index
      %c0_38 = arith.constant 0 : index
      %50 = vector.load %arg17[%c0_37, %c0_38] : memref<8x32xbf16, #tpu.memory_space<vmem>>, vector<8x32xbf16>
      tpu.vector_store %arg17[%c0_37, %c0_38], %49 {strides = array<i32>} : memref<8x32xbf16, #tpu.memory_space<vmem>>, vector<8x32xbf16>,
      %c0_39 = arith.constant 0 : index
      %c0_40 = arith.constant 0 : index
      %51 = vector.load %arg10[%c0_39, %c0_40] : memref<1x32xf32, #tpu.memory_space<vmem>>, vector<1x32xf32>
      %52 = vector.broadcast %51 : vector<1x32xf32> to vector<8x32xf32>
      %53 = arith.mulf %36, %52 : vector<8x32xf32>
      %cst_41 = arith.constant dense<0.000000e+00> : vector<8xf32>
      %54 = vector.multi_reduction <add>, %53, %cst_41 [1] : vector<8x32xf32> to vector<8xf32>
      %55 = vector.shape_cast %54 : vector<8xf32> to vector<8x1xf32>
      %c0_42 = arith.constant 0 : index
      %c0_43 = arith.constant 0 : index
      %56 = vector.load %arg11[%c0_42, %c0_43] : memref<1x32xf32, #tpu.memory_space<vmem>>, vector<1x32xf32>
      %57 = vector.broadcast %56 : vector<1x32xf32> to vector<8x32xf32>
      %58 = arith.mulf %37, %57 : vector<8x32xf32>
      %cst_44 = arith.constant dense<0.000000e+00> : vector<8xf32>
      %59 = vector.multi_reduction <add>, %58, %cst_44 [1] : vector<8x32xf32> to vector<8xf32>
      %60 = vector.shape_cast %59 : vector<8xf32> to vector<8x1xf32>
      %61 = arith.addf %55, %60 : vector<8x1xf32>
      %c0_45 = arith.constant 0 : index
      %c0_46 = arith.constant 0 : index
      %62 = vector.load %arg12[%c0_45, %c0_46] : memref<1x32xf32, #tpu.memory_space<vmem>>, vector<1x32xf32>
      %63 = vector.broadcast %62 : vector<1x32xf32> to vector<8x32xf32>
      %64 = arith.mulf %38, %63 : vector<8x32xf32>
      %cst_47 = arith.constant dense<0.000000e+00> : vector<8xf32>
      %65 = vector.multi_reduction <add>, %64, %cst_47 [1] : vector<8x32xf32> to vector<8xf32>
      %66 = vector.shape_cast %65 : vector<8xf32> to vector<8x1xf32>
      %67 = arith.addf %61, %66 : vector<8x1xf32>
      %c0_48 = arith.constant 0 : index
      %c0_49 = arith.constant 0 : index
      %68 = memref.load %arg13[%c0_48, %c0_49] : memref<1x1xf32, #tpu.memory_space<smem>>
      %69 = vector.broadcast %68 : f32 to vector<8x1xf32>
      %70 = arith.addf %67, %69 : vector<8x1xf32>
      %71 = arith.negf %70 : vector<8x1xf32>
      %72 = math.exp %71 : vector<8x1xf32>
      %cst_50 = arith.constant 1.000000e+00 : f32
      %73 = vector.broadcast %cst_50 : f32 to vector<8x1xf32>
      %74 = arith.addf %73, %72 : vector<8x1xf32>
      %75 = arith.divf %73, %74 : vector<8x1xf32>
      %c0_51 = arith.constant 0 : index
      %c0_52 = arith.constant 0 : index
      %76 = vector.load %arg15[%c0_51, %c0_52] : memref<8x1xf32, #tpu.memory_space<vmem>>, vector<8x1xf32>
      tpu.vector_store %arg15[%c0_51, %c0_52], %75 {strides = array<i32>} : memref<8x1xf32, #tpu.memory_space<vmem>>, vector<8x1xf32>,
      %cst_53 = arith.constant 0xFF800000 : f32
      %77 = vector.broadcast %cst_53 : f32 to vector<8x1xf32>
      %c0_54 = arith.constant 0 : index
      %c0_55 = arith.constant 0 : index
      %78 = vector.load %arg18[%c0_54, %c0_55] : memref<8x1xf32, #tpu.memory_space<vmem>>, vector<8x1xf32>
      tpu.vector_store %arg18[%c0_54, %c0_55], %77 {strides = array<i32>} : memref<8x1xf32, #tpu.memory_space<vmem>>, vector<8x1xf32>,
      %cst_56 = arith.constant 0.000000e+00 : f32
      %79 = vector.broadcast %cst_56 : f32 to vector<8x1xf32>
      %c0_57 = arith.constant 0 : index
      %c0_58 = arith.constant 0 : index
      %80 = vector.load %arg19[%c0_57, %c0_58] : memref<8x1xf32, #tpu.memory_space<vmem>>, vector<8x1xf32>
      tpu.vector_store %arg19[%c0_57, %c0_58], %79 {strides = array<i32>} : memref<8x1xf32, #tpu.memory_space<vmem>>, vector<8x1xf32>,
    } else {
    }
    %c0 = arith.constant 0 : index
    %c0_1 = arith.constant 0 : index
    %3 = vector.load %arg17[%c0, %c0_1] : memref<8x32xbf16, #tpu.memory_space<vmem>>, vector<8x32xbf16>
    %c0_2 = arith.constant 0 : index
    %c0_3 = arith.constant 0 : index
    %4 = vector.load %arg8[%c0_2, %c0_3] : memref<32x128xbf16, #tpu.memory_space<vmem>>, vector<32x128xbf16>
    %cst = arith.constant dense<0.000000e+00> : vector<8x128xf32>
    %5 = tpu.matmul %3, %4, %cst {dimension_numbers = #tpu.dot_dimension_numbers<[1], [0], [0], [1], [0, 0, 1, 1], [], []>} : vector<8x32xbf16>, vector<32x128xbf16>, vector<8x128xf32> -> vector<8x128xf32>
    %c0_4 = arith.constant 0 : index
    %c0_5 = arith.constant 0 : index
    %6 = vector.load %arg9[%c0_4, %c0_5] : memref<1x128xf32, #tpu.memory_space<vmem>>, vector<1x128xf32>
    %7 = vector.broadcast %6 : vector<1x128xf32> to vector<8x128xf32>
    %8 = arith.addf %5, %7 : vector<8x128xf32>
    %c0_6 = arith.constant 0 : index
    %c0_7 = arith.constant 0 : index
    %9 = vector.load %arg18[%c0_6, %c0_7] : memref<8x1xf32, #tpu.memory_space<vmem>>, vector<8x1xf32>
    %cst_8 = arith.constant dense<0xFF800000> : vector<8xf32>
    %10 = vector.multi_reduction <maximumf>, %8, %cst_8 [1] : vector<8x128xf32> to vector<8xf32>
    %11 = vector.shape_cast %10 : vector<8xf32> to vector<8x1xf32>
    %12 = arith.maximumf %9, %11 : vector<8x1xf32>
    %13 = vector.broadcast %12 : vector<8x1xf32> to vector<8x128xf32>
    %14 = arith.subf %8, %13 : vector<8x128xf32>
    %15 = math.exp %14 : vector<8x128xf32>
    %c0_9 = arith.constant 0 : index
    %c0_10 = arith.constant 0 : index
    %16 = vector.load %arg19[%c0_9, %c0_10] : memref<8x1xf32, #tpu.memory_space<vmem>>, vector<8x1xf32>
    %17 = arith.subf %9, %12 : vector<8x1xf32>
    %18 = math.exp %17 : vector<8x1xf32>
    %19 = arith.mulf %16, %18 : vector<8x1xf32>
    %cst_11 = arith.constant dense<0.000000e+00> : vector<8xf32>
    %20 = vector.multi_reduction <add>, %15, %cst_11 [1] : vector<8x128xf32> to vector<8xf32>
    %21 = vector.shape_cast %20 : vector<8xf32> to vector<8x1xf32>
    %22 = arith.addf %19, %21 : vector<8x1xf32>
    %c0_12 = arith.constant 0 : index
    %c0_13 = arith.constant 0 : index
    %23 = vector.load %arg19[%c0_12, %c0_13] : memref<8x1xf32, #tpu.memory_space<vmem>>, vector<8x1xf32>
    tpu.vector_store %arg19[%c0_12, %c0_13], %22 {strides = array<i32>} : memref<8x1xf32, #tpu.memory_space<vmem>>, vector<8x1xf32>,
    %c0_14 = arith.constant 0 : index
    %c0_15 = arith.constant 0 : index
    %24 = vector.load %arg18[%c0_14, %c0_15] : memref<8x1xf32, #tpu.memory_space<vmem>>, vector<8x1xf32>
    tpu.vector_store %arg18[%c0_14, %c0_15], %12 {strides = array<i32>} : memref<8x1xf32, #tpu.memory_space<vmem>>, vector<8x1xf32>,
    %25 = arith.index_cast %arg1 : i32 to index
    %c0_16 = arith.constant 0 : index
    %c0_17 = arith.constant 0 : index
    %26 = vector.load %arg20[%25, %c0_16, %c0_17] : memref<1x8x1xf32, #tpu.memory_space<vmem>>, vector<1x8x1xf32>
    %27 = vector.shape_cast %26 : vector<1x8x1xf32> to vector<8x1xf32>
    %28 = vector.shape_cast %12 : vector<8x1xf32> to vector<1x8x1xf32>
    tpu.vector_store %arg20[%25, %c0_16, %c0_17], %28 {strides = array<i32>} : memref<1x8x1xf32, #tpu.memory_space<vmem>>, vector<1x8x1xf32>,
    %c128_i32 = arith.constant 128 : i32
    %29 = arith.muli %arg1, %c128_i32 : i32
    %30 = tpu.assume_multiple %29, 128 : i32
    %c0_18 = arith.constant 0 : index
    %31 = arith.index_cast %30 : i32 to index
    %32 = vector.load %arg14[%c0_18, %31] : memref<8x128xf32, #tpu.memory_space<vmem>>, vector<8x128xf32>
    tpu.vector_store %arg14[%c0_18, %31], %15 {strides = array<i32>} : memref<8x128xf32, #tpu.memory_space<vmem>>, vector<8x128xf32>,
    %c0_i32_19 = arith.constant 0 : i32
    %33 = arith.cmpi eq, %arg1, %c0_i32_19 : i32
    %34 = arith.extui %33 : i1 to i32
    %c0_i32_20 = arith.constant 0 : i32
    %35 = arith.cmpi ne, %34, %c0_i32_20 : i32
    scf.if %35 {
      %c0_21 = arith.constant 0 : index
      %c0_22 = arith.constant 0 : index
      %36 = vector.load %arg19[%c0_21, %c0_22] : memref<8x1xf32, #tpu.memory_space<vmem>>, vector<8x1xf32>
      %cst_23 = arith.constant 1.000000e+00 : f32
      %37 = vector.broadcast %cst_23 : f32 to vector<8x1xf32>
      %38 = arith.divf %37, %36 : vector<8x1xf32>
      %c0_24 = arith.constant 0 : index
      %c0_25 = arith.constant 0 : index
      %39 = vector.load %arg18[%c0_24, %c0_25] : memref<8x1xf32, #tpu.memory_space<vmem>>, vector<8x1xf32>
      %c0_i32_26 = arith.constant 0 : i32
      %c128_i32_27 = arith.constant 128 : i32
      %40 = arith.muli %c0_i32_26, %c128_i32_27 : i32
      %41 = tpu.assume_multiple %40, 128 : i32
      %42 = arith.index_cast %c0_i32_26 : i32 to index
      %c0_28 = arith.constant 0 : index
      %c0_29 = arith.constant 0 : index
      %43 = vector.load %arg20[%42, %c0_28, %c0_29] : memref<1x8x1xf32, #tpu.memory_space<vmem>>, vector<1x8x1xf32>
      %44 = vector.shape_cast %43 : vector<1x8x1xf32> to vector<8x1xf32>
      %45 = arith.subf %44, %39 : vector<8x1xf32>
      %46 = math.exp %45 : vector<8x1xf32>
      %47 = arith.mulf %46, %38 : vector<8x1xf32>
      %c0_30 = arith.constant 0 : index
      %48 = arith.index_cast %41 : i32 to index
      %49 = vector.load %arg14[%c0_30, %48] : memref<8x128xf32, #tpu.memory_space<vmem>>, vector<8x128xf32>
      %50 = vector.broadcast %47 : vector<8x1xf32> to vector<8x128xf32>
      %51 = arith.mulf %49, %50 : vector<8x128xf32>
      %c0_31 = arith.constant 0 : index
      %52 = arith.index_cast %41 : i32 to index
      %53 = vector.load %arg14[%c0_31, %52] : memref<8x128xf32, #tpu.memory_space<vmem>>, vector<8x128xf32>
      tpu.vector_store %arg14[%c0_31, %52], %51 {strides = array<i32>} : memref<8x128xf32, #tpu.memory_space<vmem>>, vector<8x128xf32>,
      %c1_i32 = arith.constant 1 : i32
    } else {
    }
    return
  }
  func.func @transform_0(%arg0: i32, %arg1: i32) -> (i32, i32) {
    %c0_i32 = arith.constant 0 : i32
    %c0_i32_0 = arith.constant 0 : i32
    return %arg0, %c0_i32 : i32, i32
  }
  func.func @transform_1(%arg0: i32, %arg1: i32) -> (i32, i32) {
    %c0_i32 = arith.constant 0 : i32
    %c0_i32_0 = arith.constant 0 : i32
    return %arg0, %c0_i32 : i32, i32
  }
  func.func @transform_2(%arg0: i32, %arg1: i32) -> (i32, i32) {
    %c0_i32 = arith.constant 0 : i32
    %c0_i32_0 = arith.constant 0 : i32
    return %arg0, %c0_i32 : i32, i32
  }
  func.func @transform_3(%arg0: i32, %arg1: i32) -> (i32, i32) {
    %c0_i32 = arith.constant 0 : i32
    %c0_i32_0 = arith.constant 0 : i32
    %c0_i32_1 = arith.constant 0 : i32
    return %c0_i32, %c0_i32_0 : i32, i32
  }
  func.func @transform_4(%arg0: i32, %arg1: i32) -> (i32, i32) {
    %c0_i32 = arith.constant 0 : i32
    %c0_i32_0 = arith.constant 0 : i32
    %c0_i32_1 = arith.constant 0 : i32
    return %c0_i32, %c0_i32_0 : i32, i32
  }
  func.func @transform_5(%arg0: i32, %arg1: i32) -> (i32, i32) {
    %c0_i32 = arith.constant 0 : i32
    %c0_i32_0 = arith.constant 0 : i32
    %c0_i32_1 = arith.constant 0 : i32
    return %c0_i32, %c0_i32_0 : i32, i32
  }
  func.func @transform_6(%arg0: i32, %arg1: i32) -> (i32, i32) {
    %c0_i32 = arith.constant 0 : i32
    %c0_i32_0 = arith.constant 0 : i32
    return %c0_i32, %arg1 : i32, i32
  }
  func.func @transform_7(%arg0: i32, %arg1: i32) -> (i32, i32) {
    %c0_i32 = arith.constant 0 : i32
    %c0_i32_0 = arith.constant 0 : i32
    return %c0_i32, %arg1 : i32, i32
  }
  func.func @transform_8(%arg0: i32, %arg1: i32) -> (i32, i32) {
    %c0_i32 = arith.constant 0 : i32
    %c0_i32_0 = arith.constant 0 : i32
    %c0_i32_1 = arith.constant 0 : i32
    return %c0_i32, %c0_i32_0 : i32, i32
  }
  func.func @transform_9(%arg0: i32, %arg1: i32) -> (i32, i32) {
    %c0_i32 = arith.constant 0 : i32
    %c0_i32_0 = arith.constant 0 : i32
    %c0_i32_1 = arith.constant 0 : i32
    return %c0_i32, %c0_i32_0 : i32, i32
  }
  func.func @transform_10(%arg0: i32, %arg1: i32) -> (i32, i32) {
    %c0_i32 = arith.constant 0 : i32
    %c0_i32_0 = arith.constant 0 : i32
    %c0_i32_1 = arith.constant 0 : i32
    return %c0_i32, %c0_i32_0 : i32, i32
  }
  func.func @transform_11(%arg0: i32, %arg1: i32) -> (i32, i32) {
    %c0_i32 = arith.constant 0 : i32
    %c0_i32_0 = arith.constant 0 : i32
    %c0_i32_1 = arith.constant 0 : i32
    return %c0_i32, %c0_i32_0 : i32, i32
  }
  func.func @transform_12(%arg0: i32, %arg1: i32) -> (i32, i32) {
    %c0_i32 = arith.constant 0 : i32
    %c0_i32_0 = arith.constant 0 : i32
    return %arg0, %c0_i32 : i32, i32
  }
  func.func @transform_13(%arg0: i32, %arg1: i32) -> (i32, i32) {
    %c0_i32 = arith.constant 0 : i32
    %c0_i32_0 = arith.constant 0 : i32
    return %arg0, %c0_i32 : i32, i32
  }
  func.func @transform_14(%arg0: i32, %arg1: i32) -> (i32, i32) {
    %c0_i32 = arith.constant 0 : i32
    %c0_i32_0 = arith.constant 0 : i32
    return %arg0, %c0_i32 : i32, i32
  }
}

</mosaic_0001>

<llo_original>
// kernel: tpu_custom_call.1
$region0: #{tpu_custom_call.1}
  #allocation0 [shape = 'u32[]', space=smem, size = 0x4, offset = 0x4, fixed_abs, tag = 'smem constant byte address 0x4 - core index']
  #allocation1 [shape = 'u32[144,128]{1,0:T(1,128)}', space=vmem, size = 0x12000, scoped, tag = 'internal scratch']
  #allocation2 [shape = 'bf16[8,32]{1,0:T(8,128)(2,1)}', space=vmem, size = 0x800, scoped, tag = 'scratch operand']
  #allocation3 [shape = 'f32[8,1]{1,0:T(8,128)}', space=vmem, size = 0x1000, scoped, tag = 'scratch operand']
  #allocation4 [shape = 'f32[8,1]{1,0:T(8,128)}', space=vmem, size = 0x1000, scoped, tag = 'scratch operand']
  #allocation5 [shape = 'f32[1,8,1]{2,1,0:T(8,128)}', space=vmem, size = 0x1000, scoped, tag = 'scratch operand']
  #allocation6 [shape = 'f32[1,1]{1,0:T(1,128)S(6)}', space=smem, size = 0x200, scoped, tag = 'scoped memory for tpu_custom_call.1']
  %s0 = inlined_call_operand.hbm [shape: f32[8,32], index: 0, kind: input, shape index: {}]
  %s1 = inlined_call_operand.hbm [shape: f32[8,32], index: 1, kind: input, shape index: {}]
  %s2 = inlined_call_operand.vmem [shape: f32[8,32], index: 2, kind: input, shape index: {}]
  %s3 = inlined_call_operand.hbm [shape: f32[32,32], index: 3, kind: input, shape index: {}]
  %s4 = inlined_call_operand.hbm [shape: f32[32,32], index: 4, kind: input, shape index: {}]
  %s5 = inlined_call_operand.vmem [shape: f32[1,32], index: 5, kind: input, shape index: {}]
  %s6 = inlined_call_operand.vmem [shape: bf16[32,128], index: 6, kind: input, shape index: {}]
  %s7 = inlined_call_operand.vmem [shape: f32[1,128], index: 7, kind: input, shape index: {}]
  %s8 = inlined_call_operand.vmem [shape: f32[1,32], index: 8, kind: input, shape index: {}]
  %s9 = inlined_call_operand.vmem [shape: f32[1,32], index: 9, kind: input, shape index: {}]
  %s10 = inlined_call_operand.vmem [shape: f32[1,32], index: 10, kind: input, shape index: {}]
  %s11 = inlined_call_operand.<no memory space> [shape: f32[1,1], index: 11, kind: input, shape index: {}]
  %s12 = inlined_call_operand.hbm [shape: f32[8,128], index: 12, kind: output, shape index: {0}]
  %s13 = inlined_call_operand.vmem [shape: f32[8,1], index: 13, kind: output, shape index: {1}]
  %s14 = inlined_call_operand.hbm [shape: f32[8,32], index: 14, kind: output, shape index: {2}]
  %15 = xla_tuple %s12, %s13, %s14
  %s16 = sld [smem:[#allocation0]]
  $region98: #{tpu_custom_call.1} parent=0
    _
  %s18 = ssub.s32 1, %s16
  %s19 = scalar_select 0, %s18, %s16
  %20 = sst [smem:[#allocation6]] %s11
  $region1: #{tpu_custom_call.1} parent=0
    #allocation7 [shape = 'u8[4096]{0}', space=vmem, size = 0x1000, scoped, tag = 'input window, operand 0, single buffered']
    #allocation8 [shape = 's32[1]{0}', space=sflag, size = 0x4, scoped, tag = 'scoped memory for tpu_custom_call.1']
    #allocation9 [shape = 's32[1]{0}', space=sflag, size = 0x4, scoped, tag = 'scoped memory for tpu_custom_call.1']
    #allocation10 [shape = 'u8[4096]{0}', space=vmem, size = 0x1000, scoped, tag = 'input window, operand 1, single buffered']
    #allocation11 [shape = 's32[1]{0}', space=sflag, size = 0x4, scoped, tag = 'scoped memory for tpu_custom_call.1']
    #allocation12 [shape = 'u8[16384]{0}', space=vmem, size = 0x4000, scoped, tag = 'input window, operand 3, single buffered']
    #allocation13 [shape = 'u8[16384]{0}', space=vmem, size = 0x4000, scoped, tag = 'input window, operand 4, single buffered']
    #allocation14 [shape = 's32[1]{0}', space=sflag, size = 0x4, scoped, tag = 'scoped memory for tpu_custom_call.1']
    #allocation15 [shape = 'u8[4096]{0}', space=vmem, size = 0x1000, scoped, tag = 'output window, operand 0, single buffered']
    #allocation16 [shape = 'u8[4096]{0}', space=vmem, size = 0x1000, scoped, tag = 'output window, operand 2, single buffered']
    #allocation17 [shape = 's32[1]{0}', space=sflag, size = 0x4, scoped, tag = 'scoped memory for tpu_custom_call.1']
    %21 = vsyncpa [#allocation8], 0
    %22 = vsyncpa [#allocation11], 0
    %23 = vsyncpa [#allocation14], 0
    %24 = vsyncpa [#allocation9], 0
    %25 = vsyncpa [#allocation17], 0
    // Predicated region
    $region2: #{tpu_custom_call.1} parent=1 // pred_check
      _
    $region3: #{tpu_custom_call.1} parent=1 // pred_check_branch
      %27 = sbr.rel (0) target = $region5
    $region4: #{tpu_custom_call.1} parent=1 // pred_region
      %s29 = ssub.s32 128, 128
      %30 = vsyncadd [#allocation8], %s29
      %s32 = sshll.u32 [#allocation7], 4
      %s33 = int_to_ptr.vmem [resolvable:$true] %s32
      %35 = dma.hbm_to_vmem [thread:$0]  %s0, 128, %s33, [#allocation8]
    $region5: #{tpu_custom_call.1} parent=1 // pred_fallthru
      _
    // Predicated region
    $region6: #{tpu_custom_call.1} parent=1 // pred_check
      _
    $region7: #{tpu_custom_call.1} parent=1 // pred_check_branch
      %37 = sbr.rel (0) target = $region9
    $region8: #{tpu_custom_call.1} parent=1 // pred_region
      %s39 = ssub.s32 128, 128
      %40 = vsyncadd [#allocation11], %s39
      %s42 = sshll.u32 [#allocation10], 4
      %s43 = int_to_ptr.vmem [resolvable:$true] %s42
      %45 = dma.hbm_to_vmem [thread:$0]  %s1, 128, %s43, [#allocation11]
    $region9: #{tpu_custom_call.1} parent=1 // pred_fallthru
      _
    // Predicated region
    $region10: #{tpu_custom_call.1} parent=1 // pred_check
      _
    $region11: #{tpu_custom_call.1} parent=1 // pred_check_branch
      %47 = sbr.rel (0) target = $region13
    $region12: #{tpu_custom_call.1} parent=1 // pred_region
      _
    $region13: #{tpu_custom_call.1} parent=1 // pred_fallthru
      _
    // Predicated region
    $region14: #{tpu_custom_call.1} parent=1 // pred_check
      _
    $region15: #{tpu_custom_call.1} parent=1 // pred_check_branch
      %49 = sbr.rel (0) target = $region17
    $region16: #{tpu_custom_call.1} parent=1 // pred_region
      %s51 = ssub.s32 512, 512
      %52 = vsyncadd [#allocation11], %s51
      %s53 = sshll.u32 [#allocation12], 4
      %s54 = int_to_ptr.vmem [resolvable:$true] %s53
      %59 = dma.hbm_to_vmem [thread:$0]  %s3, 512, %s54, [#allocation11], 128, 128, 8
    $region17: #{tpu_custom_call.1} parent=1 // pred_fallthru
      _
    // Predicated region
    $region18: #{tpu_custom_call.1} parent=1 // pred_check
      _
    $region19: #{tpu_custom_call.1} parent=1 // pred_check_branch
      %61 = sbr.rel (0) target = $region21
    $region20: #{tpu_custom_call.1} parent=1 // pred_region
      %s63 = ssub.s32 512, 512
      %64 = vsyncadd [#allocation14], %s63
      %s65 = sshll.u32 [#allocation13], 4
      %s66 = int_to_ptr.vmem [resolvable:$true] %s65
      %71 = dma.hbm_to_vmem [thread:$0]  %s4, 512, %s66, [#allocation14], 128, 128, 8
    $region21: #{tpu_custom_call.1} parent=1 // pred_fallthru
      _
    // Predicated region
    $region22: #{tpu_custom_call.1} parent=1 // pred_check
      _
    $region23: #{tpu_custom_call.1} parent=1 // pred_check_branch
      %73 = sbr.rel (0) target = $region25
    $region24: #{tpu_custom_call.1} parent=1 // pred_region
      _
    $region25: #{tpu_custom_call.1} parent=1 // pred_fallthru
      _
    // Predicated region
    $region26: #{tpu_custom_call.1} parent=1 // pred_check
      _
    $region27: #{tpu_custom_call.1} parent=1 // pred_check_branch
      %75 = sbr.rel (0) target = $region29
    $region28: #{tpu_custom_call.1} parent=1 // pred_region
      _
    $region29: #{tpu_custom_call.1} parent=1 // pred_fallthru
      _
    // Predicated region
    $region30: #{tpu_custom_call.1} parent=1 // pred_check
      _
    $region31: #{tpu_custom_call.1} parent=1 // pred_check_branch
      %77 = sbr.rel (0) target = $region33
    $region32: #{tpu_custom_call.1} parent=1 // pred_region
      _
    $region33: #{tpu_custom_call.1} parent=1 // pred_fallthru
      _
    // Predicated region
    $region34: #{tpu_custom_call.1} parent=1 // pred_check
      _
    $region35: #{tpu_custom_call.1} parent=1 // pred_check_branch
      %79 = sbr.rel (0) target = $region37
    $region36: #{tpu_custom_call.1} parent=1 // pred_region
      _
    $region37: #{tpu_custom_call.1} parent=1 // pred_fallthru
      _
    // Predicated region
    $region38: #{tpu_custom_call.1} parent=1 // pred_check
      _
    $region39: #{tpu_custom_call.1} parent=1 // pred_check_branch
      %81 = sbr.rel (0) target = $region41
    $region40: #{tpu_custom_call.1} parent=1 // pred_region
      _
    $region41: #{tpu_custom_call.1} parent=1 // pred_fallthru
      _
    // Predicated region
    $region42: #{tpu_custom_call.1} parent=1 // pred_check
      _
    $region43: #{tpu_custom_call.1} parent=1 // pred_check_branch
      %83 = sbr.rel (0) target = $region45
    $region44: #{tpu_custom_call.1} parent=1 // pred_region
      _
    $region45: #{tpu_custom_call.1} parent=1 // pred_fallthru
      _
    // Predicated region
    $region46: #{tpu_custom_call.1} parent=1 // pred_check
      _
    $region47: #{tpu_custom_call.1} parent=1 // pred_check_branch
      %85 = sbr.rel (0) target = $region49
    $region48: #{tpu_custom_call.1} parent=1 // pred_region
      _
    $region49: #{tpu_custom_call.1} parent=1 // pred_fallthru
      _
    // Predicated region
    $region50: #{tpu_custom_call.1} parent=1 // pred_check
      _
    $region51: #{tpu_custom_call.1} parent=1 // pred_check_branch
      %87 = sbr.rel (0) target = $region53
    $region52: #{tpu_custom_call.1} parent=1 // pred_region
      %88 = dma.done [#allocation8], 128
    $region53: #{tpu_custom_call.1} parent=1 // pred_fallthru
      _
    // Predicated region
    $region54: #{tpu_custom_call.1} parent=1 // pred_check
      _
    $region55: #{tpu_custom_call.1} parent=1 // pred_check_branch
      %90 = sbr.rel (0) target = $region57
    $region56: #{tpu_custom_call.1} parent=1 // pred_region
      %91 = dma.done [#allocation11], 128
    $region57: #{tpu_custom_call.1} parent=1 // pred_fallthru
      _
    // Predicated region
    $region58: #{tpu_custom_call.1} parent=1 // pred_check
      _
    $region59: #{tpu_custom_call.1} parent=1 // pred_check_branch
      %93 = sbr.rel (0) target = $region61
    $region60: #{tpu_custom_call.1} parent=1 // pred_region
      %94 = dma.done [#allocation11], 512
    $region61: #{tpu_custom_call.1} parent=1 // pred_fallthru
      _
    // Predicated region
    $region62: #{tpu_custom_call.1} parent=1 // pred_check
      _
    $region63: #{tpu_custom_call.1} parent=1 // pred_check_branch
      %96 = sbr.rel (0) target = $region65
    $region64: #{tpu_custom_call.1} parent=1 // pred_region
      %97 = dma.done [#allocation14], 512
    $region65: #{tpu_custom_call.1} parent=1 // pred_fallthru
      _
    %p99 = scmp.eq.s32.totalorder 0, 0
    // Predicated region
    $region66: #{tpu_custom_call.1} parent=1 // pred_check
      %p100 = pneg %p99
    $region67: #{tpu_custom_call.1} parent=1 // pred_check_branch
      %102 = sbr.rel (%p100) target = $region69
    $region68: #{tpu_custom_call.1} parent=1 // pred_region
      %v103 = vld [vmem:[#allocation7] sm:$0xff]
      %v104 = vld [vmem:[#allocation10] sm:$0xff]
      %v105 = vld [vmem:[%s2] sm:$0xff]
      %v106 = vld [vmem:[#allocation12] sm:$0xff]
      %v107 = vld [vmem:[#allocation12 + $0x8] sm:$0xff]
      %v108 = vld [vmem:[#allocation12 + $0x10] sm:$0xff]
      %v109 = vld [vmem:[#allocation12 + $0x18] sm:$0xff]
      %v110 = vld [vmem:[#allocation13] sm:$0xff]
      %v111 = vld [vmem:[#allocation13 + $0x8] sm:$0xff]
      %v112 = vld [vmem:[#allocation13 + $0x10] sm:$0xff]
      %v113 = vld [vmem:[#allocation13 + $0x18] sm:$0xff]
      %vm114 = vcmask 261120
      %v116 = vsel %vm114, %v104, 0
      %118 = vmatprep.subr.mxu0 0.0
      %119 = vmatpush1.msra.mxu0 %v110
      %120 = vmatprep.subr.mxu0 0.0
      %121 = vmatpush1.msra.mxu0 %v111
      %122 = vmatprep.subr.mxu0 0.0
      %123 = vmatpush1.msra.mxu0 %v112
      %124 = vmatprep.subr.mxu0 0.0
      %125 = vmatpush1.msra.mxu0 %v113
      %126 = vmatprep.subr.mxu0 0.0
      %127 = vmatpush1.msra.mxu0 0.0
      %128 = vmatprep.subr.mxu0 0.0
      %129 = vmatpush1.msra.mxu0 0.0
      %130 = vmatprep.subr.mxu0 0.0
      %131 = vmatpush1.msra.mxu0 0.0
      %132 = vmatprep.subr.mxu0 0.0
      %133 = vmatpush1.msra.mxu0 0.0
      %134 = vmatprep.subr.mxu0 0.0
      %135 = vmatpush1.msra.mxu0 0.0
      %136 = vmatprep.subr.mxu0 0.0
      %137 = vmatpush1.msra.mxu0 0.0
      %138 = vmatprep.subr.mxu0 0.0
      %139 = vmatpush1.msra.mxu0 0.0
      %140 = vmatprep.subr.mxu0 0.0
      %141 = vmatpush1.msra.mxu0 0.0
      %142 = vmatprep.subr.mxu0 0.0
      %143 = vmatpush1.msra.mxu0 0.0
      %144 = vmatprep.subr.mxu0 0.0
      %145 = vmatpush1.msra.mxu0 0.0
      %146 = vmatprep.subr.mxu0 0.0
      %147 = vmatpush1.msra.mxu0 0.0
      %148 = vmatprep.subr.mxu0 0.0
      %149 = vmatpush1.msra.mxu0 0.0
      %150 = vmatprep.subr.mxu0 0.0
      %151 = vmatpush1.msra.mxu0 0.0
      %152 = vmatprep.subr.mxu0 0.0
      %153 = vmatpush1.msra.mxu0 0.0
      %154 = vmatprep.subr.mxu0 0.0
      %155 = vmatpush1.msra.mxu0 0.0
      %156 = vmatprep.subr.mxu0 0.0
      %157 = vmatpush1.msra.mxu0 0.0
      %158 = vmatprep.subr.mxu0 0.0
      %159 = vmatpush1.msra.mxu0 0.0
      %160 = vmatprep.subr.mxu0 0.0
      %161 = vmatpush1.msra.mxu0 0.0
      %162 = vmatprep.subr.mxu0 0.0
      %163 = vmatpush1.msra.mxu0 0.0
      %164 = vmatprep.subr.mxu0 0.0
      %165 = vmatpush1.msra.mxu0 0.0
      %166 = vmatprep.subr.mxu0 0.0
      %167 = vmatpush1.msra.mxu0 0.0
      %168 = vmatprep.subr.mxu0 0.0
      %169 = vmatpush1.msra.mxu0 0.0
      %170 = vmatprep.subr.mxu0 0.0
      %171 = vmatpush1.msra.mxu0 0.0
      %172 = vmatprep.subr.mxu0 0.0
      %173 = vmatpush1.msra.mxu0 0.0
      %174 = vmatprep.subr.mxu0 0.0
      %175 = vmatpush1.msra.mxu0 0.0
      %176 = vmatprep.subr.mxu0 0.0
      %177 = vmatpush1.msra.mxu0 0.0
      %178 = vmatprep.subr.mxu0 0.0
      %179 = vmatpush1.msra.mxu0 0.0
      %180 = vmatprep.subr.mxu0 0.0
      %181 = vmatpush1.msra.mxu0 0.0
      %182 = vmatprep.mubr.f32.mxu0 0.0
      %183 = vmatmul.mubr.f32.gmra.mrb[0].mxu0 %v116
      %v184 = vpop.f32.mrb[0].mxu0
      %v185 = vadd.f32 0.0, %v184
      %v186 = vpop.f32.mrb[0].mxu0
      %187 = vdwg.mxu0
      %v189 = vsel %vm114, %v103, 0
      %191 = vmatprep.subr.mxu0 0.0
      %192 = vmatpush1.msra.mxu0 %v106
      %193 = vmatprep.subr.mxu0 0.0
      %194 = vmatpush1.msra.mxu0 %v107
      %195 = vmatprep.subr.mxu0 0.0
      %196 = vmatpush1.msra.mxu0 %v108
      %197 = vmatprep.subr.mxu0 0.0
      %198 = vmatpush1.msra.mxu0 %v109
      %199 = vmatprep.subr.mxu0 0.0
      %200 = vmatpush1.msra.mxu0 0.0
      %201 = vmatprep.subr.mxu0 0.0
      %202 = vmatpush1.msra.mxu0 0.0
      %203 = vmatprep.subr.mxu0 0.0
      %204 = vmatpush1.msra.mxu0 0.0
      %205 = vmatprep.subr.mxu0 0.0
      %206 = vmatpush1.msra.mxu0 0.0
      %207 = vmatprep.subr.mxu0 0.0
      %208 = vmatpush1.msra.mxu0 0.0
      %209 = vmatprep.subr.mxu0 0.0
      %210 = vmatpush1.msra.mxu0 0.0
      %211 = vmatprep.subr.mxu0 0.0
      %212 = vmatpush1.msra.mxu0 0.0
      %213 = vmatprep.subr.mxu0 0.0
      %214 = vmatpush1.msra.mxu0 0.0
      %215 = vmatprep.subr.mxu0 0.0
      %216 = vmatpush1.msra.mxu0 0.0
      %217 = vmatprep.subr.mxu0 0.0
      %218 = vmatpush1.msra.mxu0 0.0
      %219 = vmatprep.subr.mxu0 0.0
      %220 = vmatpush1.msra.mxu0 0.0
      %221 = vmatprep.subr.mxu0 0.0
      %222 = vmatpush1.msra.mxu0 0.0
      %223 = vmatprep.subr.mxu0 0.0
      %224 = vmatpush1.msra.mxu0 0.0
      %225 = vmatprep.subr.mxu0 0.0
      %226 = vmatpush1.msra.mxu0 0.0
      %227 = vmatprep.subr.mxu0 0.0
      %228 = vmatpush1.msra.mxu0 0.0
      %229 = vmatprep.subr.mxu0 0.0
      %230 = vmatpush1.msra.mxu0 0.0
      %231 = vmatprep.subr.mxu0 0.0
      %232 = vmatpush1.msra.mxu0 0.0
      %233 = vmatprep.subr.mxu0 0.0
      %234 = vmatpush1.msra.mxu0 0.0
      %235 = vmatprep.subr.mxu0 0.0
      %236 = vmatpush1.msra.mxu0 0.0
      %237 = vmatprep.subr.mxu0 0.0
      %238 = vmatpush1.msra.mxu0 0.0
      %239 = vmatprep.subr.mxu0 0.0
      %240 = vmatpush1.msra.mxu0 0.0
      %241 = vmatprep.subr.mxu0 0.0
      %242 = vmatpush1.msra.mxu0 0.0
      %243 = vmatprep.subr.mxu0 0.0
      %244 = vmatpush1.msra.mxu0 0.0
      %245 = vmatprep.subr.mxu0 0.0
      %246 = vmatpush1.msra.mxu0 0.0
      %247 = vmatprep.subr.mxu0 0.0
      %248 = vmatpush1.msra.mxu0 0.0
      %249 = vmatprep.subr.mxu0 0.0
      %250 = vmatpush1.msra.mxu0 0.0
      %251 = vmatprep.subr.mxu0 0.0
      %252 = vmatpush1.msra.mxu0 0.0
      %253 = vmatprep.subr.mxu0 0.0
      %254 = vmatpush1.msra.mxu0 0.0
      %255 = vmatprep.mubr.f32.mxu0 0.0
      %256 = vmatmul.mubr.f32.gmra.mrb[0].mxu0 %v189
      %v257 = vpop.f32.mrb[0].mxu0
      %v258 = vadd.f32 %v185, %v257
      %v259 = vpop.f32.mrb[0].mxu0
      %260 = vdwg.mxu0
      %v261 = vld [vmem:[%s5] sm:$0x1]
      %v263 = vlaneseq
      %v264 = vshrl.u32 %v263, 7
      %v265 = vsub.s32 0, %v264
      %v266 = vrot.slane %v261, %v265
      %v268 = vadd.f32 %v258, %v266
      %v269 = vtanh.pop %v268
      %270 = vst.msk [vmem:[#allocation16] sm:$0xff] %vm114, %v269
      %v271 = vpack.c.bf16 %v269, %v269
      %vm272 = vcmask 257024
      %273 = vst.msk [vmem:[#allocation2] sm:$0xf] %vm272, %v271
      %v274 = vld [vmem:[%s8] sm:$0x1]
      %v276 = vlaneseq
      %v277 = vshrl.u32 %v276, 7
      %v278 = vsub.s32 0, %v277
      %v279 = vrot.slane %v274, %v278
      %v281 = vmul.f32 %v103, %v279
      %v282 = vsel %vm114, %v281, 0.0
      %283 = vadd.xlane.f32.xlu0 %v282
      %v284 = vpop.xlane.xlu0 %283
      %v285 = vld [vmem:[%s9] sm:$0x1]
      %v287 = vlaneseq
      %v288 = vshrl.u32 %v287, 7
      %v289 = vsub.s32 0, %v288
      %v290 = vrot.slane %v285, %v289
      %v292 = vmul.f32 %v104, %v290
      %v293 = vsel %vm114, %v292, 0.0
      %294 = vadd.xlane.f32.xlu0 %v293
      %v295 = vpop.xlane.xlu0 %294
      %v296 = vadd.f32 %v284, %v295
      %v297 = vld [vmem:[%s10] sm:$0x1]
      %v299 = vlaneseq
      %v300 = vshrl.u32 %v299, 7
      %v301 = vsub.s32 0, %v300
      %v302 = vrot.slane %v297, %v301
      %v304 = vmul.f32 %v105, %v302
      %v305 = vsel %vm114, %v304, 0.0
      %306 = vadd.xlane.f32.xlu0 %v305
      %v307 = vpop.xlane.xlu0 %306
      %v308 = vadd.f32 %v296, %v307
      %s309 = sld [smem:[#allocation6]]
      %v310 = vstv %s309
      %v311 = vadd.f32 %v308, %v310
      %v312 = vxor.u32 %v311, 2147483648
      %v313 = vmul.f32 %v312, 1.442695
      %v314 = vpow.pop %v313
      %v315 = vadd.f32 %v314, 1.0
      %v316 = vrcp.pop %v315
      %v317 = vmul.f32 1.0, %v316
      %vm318 = vcmask 7168
      %319 = vst.msk [vmem:[%s13] sm:$0xff] %vm318, %v317
      %320 = vst.msk [vmem:[#allocation3] sm:$0xff] %vm318, -inf
      %321 = vst.msk [vmem:[#allocation4] sm:$0xff] %vm318, 0.0
    $region69: #{tpu_custom_call.1} parent=1 // pred_fallthru
      _
    %v322 = vld [vmem:[#allocation2] sm:$0xf]
    %v323 = vld [vmem:[%s6] sm:$0xf]
    %v324 = vld [vmem:[%s6 + $0x4] sm:$0xf]
    %v325 = vld [vmem:[%s6 + $0x8] sm:$0xf]
    %v326 = vld [vmem:[%s6 + $0xc] sm:$0xf]
    %v327 = vld [vmem:[%s7] sm:$0x1]
    %v329 = vlaneseq
    %v330 = vshrl.u32 %v329, 7
    %v331 = vsub.s32 0, %v330
    %v332 = vrot.slane %v327, %v331
    %v338 = vunpack.c.l.b16 %v323
    %v339 = vunpack.c.l.b16 %v324
    %v340 = vunpack.c.l.b16 %v325
    %v341 = vunpack.c.l.b16 %v326
    %v342 = vpack.c.b16 %v339, %v338
    %v343 = vpack.c.b16 %v341, %v340
    %vm346 = vcmask 261120
    %v348 = vsel %vm346, %v322, 0
    %350 = vmatprep.subr.bf16.mxu0 0
    %351 = vmatpush1.bf16.msra.mxu0 %v342
    %352 = vmatprep.subr.bf16.mxu0 0
    %353 = vmatpush1.bf16.msra.mxu0 %v343
    %354 = vmatprep.subr.bf16.mxu0 0
    %355 = vmatpush1.bf16.msra.mxu0 0
    %356 = vmatprep.subr.bf16.mxu0 0
    %357 = vmatpush1.bf16.msra.mxu0 0
    %358 = vmatprep.subr.bf16.mxu0 0
    %359 = vmatpush1.bf16.msra.mxu0 0
    %360 = vmatprep.subr.bf16.mxu0 0
    %361 = vmatpush1.bf16.msra.mxu0 0
    %362 = vmatprep.subr.bf16.mxu0 0
    %363 = vmatpush1.bf16.msra.mxu0 0
    %364 = vmatprep.subr.bf16.mxu0 0
    %365 = vmatpush1.bf16.msra.mxu0 0
    %366 = vmatprep.subr.bf16.mxu0 0
    %367 = vmatpush1.bf16.msra.mxu0 0
    %368 = vmatprep.subr.bf16.mxu0 0
    %369 = vmatpush1.bf16.msra.mxu0 0
    %370 = vmatprep.subr.bf16.mxu0 0
    %371 = vmatpush1.bf16.msra.mxu0 0
    %372 = vmatprep.subr.bf16.mxu0 0
    %373 = vmatpush1.bf16.msra.mxu0 0
    %374 = vmatprep.subr.bf16.mxu0 0
    %375 = vmatpush1.bf16.msra.mxu0 0
    %376 = vmatprep.subr.bf16.mxu0 0
    %377 = vmatpush1.bf16.msra.mxu0 0
    %378 = vmatprep.subr.bf16.mxu0 0
    %379 = vmatpush1.bf16.msra.mxu0 0
    %380 = vmatprep.subr.bf16.mxu0 0
    %381 = vmatpush1.bf16.msra.mxu0 0
    %382 = vmatprep.mubr.bf16.mxu0 0
    %383 = vmatmul.mubr.bf16.gmra.mrb[0].mxu0 %v348
    %v384 = vpop.f32.mrb[0].mxu0
    %v385 = vadd.f32 %v332, %v384
    %v386 = vpop.f32.mrb[0].mxu0
    %v387 = vpop.f32.mrb[0].mxu0
    %v388 = vpop.f32.mrb[0].mxu0
    %389 = vdwg.mxu0
    %v390 = vld [vmem:[#allocation3] sm:$0xff]
    %391 = vmax.xlane.f32.xlu0 %v385
    %v392 = vpop.xlane.xlu0 %391
    %v393 = vmax.f32 %v390, %v392
    %395 = vset.pattern.permute.xlu0 0
    %396 = vperm.xlu0 %395, %v393
    %v397 = vpop.permute.xlu0 %396
    %v399 = vsub.f32 %v385, %v397
    %v400 = vmul.f32 %v399, 1.442695
    %v401 = vpow.pop %v400
    %v402 = vld [vmem:[#allocation4] sm:$0xff]
    %v403 = vsub.f32 %v390, %v393
    %v404 = vmul.f32 %v403, 1.442695
    %v405 = vpow.pop %v404
    %v406 = vmul.f32 %v402, %v405
    %407 = vadd.xlane.f32.xlu0 %v401
    %v408 = vpop.xlane.xlu0 %407
    %v409 = vadd.f32 %v406, %v408
    %vm410 = vcmask 7168
    %411 = vst.msk [vmem:[#allocation4] sm:$0xff] %vm410, %v409
    %412 = vst.msk [vmem:[#allocation3] sm:$0xff] %vm410, %v393
    %s413 = smul.u32 0, 8
    %s414 = scalar_lea.vmem [#allocation5], %s413
    %415 = vst.msk [vmem:[%s414] sm:$0xff] %vm410, %v393
    %s416 = smul.u32 0, 128
    %s417 = sshra.s32 %s416, 7
    %s418 = sand.u32 %s416, 127
    %s419 = scalar_lea.vmem [#allocation15], %s417
    %420 = vst [vmem:[%s419] sm:$0xff] %v401
    // Predicated region
    $region70: #{tpu_custom_call.1} parent=1 // pred_check
      %p421 = pneg %p99
    $region71: #{tpu_custom_call.1} parent=1 // pred_check_branch
      %423 = sbr.rel (%p421) target = $region73
    $region72: #{tpu_custom_call.1} parent=1 // pred_region
      %v424 = vld [vmem:[#allocation4] sm:$0xff]
      %v425 = vrcp.pop %v424
      %v426 = vmul.f32 1.0, %v425
      %v427 = vld [vmem:[#allocation3] sm:$0xff]
      %v428 = vld [vmem:[#allocation5] sm:$0xff]
      %v429 = vsub.f32 %v428, %v427
      %v430 = vmul.f32 %v429, 1.442695
      %v431 = vpow.pop %v430
      %v432 = vmul.f32 %v431, %v426
      %v433 = vld [vmem:[#allocation15] sm:$0xff]
      %435 = vset.pattern.permute.xlu0 0
      %436 = vperm.xlu0 %435, %v432
      %v437 = vpop.permute.xlu0 %436
      %v439 = vmul.f32 %v433, %v437
      %440 = vst [vmem:[#allocation15] sm:$0xff] %v439
    $region73: #{tpu_custom_call.1} parent=1 // pred_fallthru
      _
    // Predicated region
    $region74: #{tpu_custom_call.1} parent=1 // pred_check
      _
    $region75: #{tpu_custom_call.1} parent=1 // pred_check_branch
      %442 = sbr.rel (0) target = $region77
    $region76: #{tpu_custom_call.1} parent=1 // pred_region
      %s444 = ssub.s32 128, 128
      %445 = vsyncadd [#allocation9], %s444
      %s447 = sshll.u32 [#allocation15], 4
      %s448 = int_to_ptr.vmem [resolvable:$true] %s447
      %450 = dma.vmem_to_hbm [thread:$0]  %s448, 128, %s12, [#allocation9]
    $region77: #{tpu_custom_call.1} parent=1 // pred_fallthru
      _
    // Predicated region
    $region78: #{tpu_custom_call.1} parent=1 // pred_check
      _
    $region79: #{tpu_custom_call.1} parent=1 // pred_check_branch
      %452 = sbr.rel (0) target = $region81
    $region80: #{tpu_custom_call.1} parent=1 // pred_region
      _
    $region81: #{tpu_custom_call.1} parent=1 // pred_fallthru
      _
    // Predicated region
    $region82: #{tpu_custom_call.1} parent=1 // pred_check
      _
    $region83: #{tpu_custom_call.1} parent=1 // pred_check_branch
      %454 = sbr.rel (0) target = $region85
    $region84: #{tpu_custom_call.1} parent=1 // pred_region
      %s456 = ssub.s32 128, 128
      %457 = vsyncadd [#allocation17], %s456
      %s459 = sshll.u32 [#allocation16], 4
      %s460 = int_to_ptr.vmem [resolvable:$true] %s459
      %462 = dma.vmem_to_hbm [thread:$0]  %s460, 128, %s14, [#allocation17]
    $region85: #{tpu_custom_call.1} parent=1 // pred_fallthru
      _
    // Predicated region
    $region86: #{tpu_custom_call.1} parent=1 // pred_check
      _
    $region87: #{tpu_custom_call.1} parent=1 // pred_check_branch
      %464 = sbr.rel (0) target = $region89
    $region88: #{tpu_custom_call.1} parent=1 // pred_region
      %465 = dma.done [#allocation9], 128
    $region89: #{tpu_custom_call.1} parent=1 // pred_fallthru
      _
    // Predicated region
    $region90: #{tpu_custom_call.1} parent=1 // pred_check
      _
    $region91: #{tpu_custom_call.1} parent=1 // pred_check_branch
      %467 = sbr.rel (0) target = $region93
    $region92: #{tpu_custom_call.1} parent=1 // pred_region
      _
    $region93: #{tpu_custom_call.1} parent=1 // pred_fallthru
      _
    // Predicated region
    $region94: #{tpu_custom_call.1} parent=1 // pred_check
      _
    $region95: #{tpu_custom_call.1} parent=1 // pred_check_branch
      %469 = sbr.rel (0) target = $region97
    $region96: #{tpu_custom_call.1} parent=1 // pred_region
      %470 = dma.done [#allocation17], 128
    $region97: #{tpu_custom_call.1} parent=1 // pred_fallthru
      _
    %471 = vsyncpa [#allocation8], 1
    %472 = vsyncpa [#allocation11], 1
    %473 = vsyncpa [#allocation14], 1
    %474 = vsyncpa [#allocation9], 1
    %475 = vsyncpa [#allocation17], 1

</llo_original>
